<compile_context>
chip_gen: v7x
topology: tpu7x:2x2x1
jax: 0.10.0
libtpu: 0.0.40
codegen_flags: <defaults>
</compile_context>

<pallas_src>
import functools
import math

import jax
import jax.numpy as jnp
from jax.experimental import pallas as pl
from jax.experimental.pallas import tpu as pltpu


_MCAO_LANES = 512              # lane width of the mcao slab (multiple of 128)
_MCAO_MAX_BLOCK_ROWS = 4096    # 4096*512*4 B = 8 MiB / block (16 MiB dbl-buffered)


def _round_up(x, m):
    return ((x + m - 1) // m) * m


# ----------------------------------------------------------------------------
# Pallas kernel
# ----------------------------------------------------------------------------
def combined_loss_kernel(fp_ref, tg_ref, pv_ref, mcao_ref, out_ref, acc_ref, *,
                         inv_n_final, inv_n_mcao, alpha, beta, gamma, delta,
                         bce_pos, bce_neg):
    # fp_ref   : (1, B*P)            f32 VMEM  final-timestep predictions
    # tg_ref   : (1, B*P)            f32 VMEM  targets
    # pv_ref   : (1, B*P)            f32 VMEM  prev_price (pre-broadcast)
    # mcao_ref : (block_rows, LANES) f32 VMEM  one block of the mcao slab
    # out_ref  : (5,)                f32 SMEM  [total, mse, dir, smooth, mcao]
    # acc_ref  : (1,)                f32 SMEM  running |mcao| sum
    step = pl.program_id(0)
    last = pl.num_programs(0) - 1

    @pl.when(step == 0)
    def _init():
        acc_ref[0] = jnp.float32(0.0)

    # Purely memory-bound |mcao| partial sum; zero padding contributes 0.
    acc_ref[0] += jnp.sum(jnp.abs(mcao_ref[...]))

    @pl.when(step == last)
    def _finalize():
        final_pred = fp_ref[...]                       # (1, N)
        targets = tg_ref[...]                          # (1, N)
        prev = pv_ref[...]                             # (1, N)

        diff = final_pred - targets
        pred_diff = final_pred - prev
        target_diff = targets - prev

        sq = diff * diff
        # BCE-with-logits where the "logits" are exactly {0,1} folds to:
        #   logit==1 : 1 - label + log(1 + e^-1)   (= bce_pos - label)
        #   logit==0 : log 2                       (= bce_neg)
        label = jnp.where(target_diff > 0.0, 1.0, 0.0)
        bce = jnp.where(pred_diff > 0.0, bce_pos - label, bce_neg)
        absd = jnp.abs(pred_diff)

        # One cross-lane reduce chain for all three terms.
        stacked = jnp.concatenate([sq, bce, absd], axis=0)   # (3, N)
        partial = jnp.sum(stacked, axis=1, keepdims=True)    # (3, 1)

        mse = partial[0, 0] * inv_n_final
        direction = partial[1, 0] * inv_n_final
        smoothness = partial[2, 0] * inv_n_final
        mcao_reg = acc_ref[0] * inv_n_mcao

        total = (alpha * mse + beta * direction
                 + gamma * smoothness + delta * mcao_reg)

        out_ref[0] = total
        out_ref[1] = mse
        out_ref[2] = direction
        out_ref[3] = smoothness
        out_ref[4] = mcao_reg


# ----------------------------------------------------------------------------
# Wrapper
# ----------------------------------------------------------------------------
def lstm_combined_loss(predictions, targets, prev_price, mcao_features,
                       alpha=0.6, beta=0.3, gamma=0.05, delta=0.05):
    B, S, P = predictions.shape
    n_final = B * P

    # Only the last timestep goes through the kernel (S x fewer HBM bytes).
    final_pred = jax.lax.slice_in_dim(predictions, S - 1, S, axis=1)
    final_pred = final_pred.reshape(1, n_final).astype(jnp.float32)
    targets2d = targets.reshape(1, n_final).astype(jnp.float32)
    prev2d = jnp.broadcast_to(prev_price.reshape(B, 1).astype(jnp.float32),
                              (B, P)).reshape(1, n_final)

    # Lane-dense, zero-padded mcao slab: (rows_pad, LANES), gridded over rows.
    n_mcao = int(mcao_features.size)
    rows = max(1, -(-n_mcao // _MCAO_LANES))
    block_rows = min(_MCAO_MAX_BLOCK_ROWS, _round_up(rows, 8))
    rows_pad = _round_up(rows, block_rows)
    mcao_flat = mcao_features.reshape(-1).astype(jnp.float32)
    pad = rows_pad * _MCAO_LANES - n_mcao
    if pad:
        mcao_flat = jnp.pad(mcao_flat, (0, pad))
    mcao2d = mcao_flat.reshape(rows_pad, _MCAO_LANES)
    grid = (rows_pad // block_rows,)

    kernel = functools.partial(
        combined_loss_kernel,
        inv_n_final=1.0 / float(n_final),
        inv_n_mcao=1.0 / float(n_mcao),
        alpha=float(alpha), beta=float(beta),
        gamma=float(gamma), delta=float(delta),
        bce_pos=1.0 + math.log1p(math.exp(-1.0)),
        bce_neg=math.log(2.0))

    out = pl.pallas_call(
        kernel,
        out_shape=jax.ShapeDtypeStruct((5,), jnp.float32),
        grid=grid,
        in_specs=[
            pl.BlockSpec((1, n_final), lambda i: (0, 0)),               # final_pred
            pl.BlockSpec((1, n_final), lambda i: (0, 0)),               # targets
            pl.BlockSpec((1, n_final), lambda i: (0, 0)),               # prev_price
            pl.BlockSpec((block_rows, _MCAO_LANES), lambda i: (i, 0)),  # mcao slab
        ],
        out_specs=pl.BlockSpec(memory_space=pltpu.MemorySpace.SMEM),
        scratch_shapes=[pltpu.SMEM((1,), jnp.float32)],
        compiler_params=pltpu.CompilerParams(
            dimension_semantics=("arbitrary",),
            vmem_limit_bytes=32 * 1024 * 1024),
    )(final_pred, targets2d, prev2d, mcao2d)

    total_loss = out[0]
    components = {
        "mse": out[1],
        "direction": out[2],
        "smoothness": out[3],
        "mcao_reg": out[4],
    }
    return total_loss, components


# ----------------------------------------------------------------------------
# Pure-JAX reference (correctness check only; uses the full BCE formula)
# ----------------------------------------------------------------------------
def _bce_with_logits_ref(logits, labels):
    return (jnp.maximum(logits, 0.0) - logits * labels
            + jnp.log1p(jnp.exp(-jnp.abs(logits))))


def lstm_combined_loss_ref(predictions, targets, prev_price, mcao_features,
                           alpha=0.6, beta=0.3, gamma=0.05, delta=0.05):
    final_pred = predictions[:, -1, :]
    prev = prev_price[:, None]
    mse = jnp.mean((final_pred - targets) ** 2)
    pred_diff = final_pred - prev
    target_diff = targets - prev
    logits = (pred_diff > 0).astype(jnp.float32)
    labels = (target_diff > 0).astype(jnp.float32)
    direction = jnp.mean(_bce_with_logits_ref(logits, labels))
    smoothness = jnp.mean(jnp.abs(pred_diff))
    mcao_reg = jnp.mean(jnp.abs(mcao_features))
    total = alpha * mse + beta * direction + gamma * smoothness + delta * mcao_reg
    return total, {"mse": mse, "direction": direction,
                   "smoothness": smoothness, "mcao_reg": mcao_reg}


# ----------------------------------------------------------------------------
# main
# ----------------------------------------------------------------------------
if __name__ == "__main__":
    B, S = 2, 8
    input_dim = 4          # mcao feature channels (from the upstream fusion model)

    root = jax.random.PRNGKey(0)
    k1, k2, k3, k4 = jax.random.split(root, 4)

    predictions = jax.random.normal(k1, (B, S, 1), jnp.float32)
    targets = jax.random.normal(k2, (B, 1), jnp.float32)
    prev_price = jax.random.normal(k3, (B,), jnp.float32)
    mcao_features = jax.random.normal(k4, (B, S, input_dim), jnp.float32)

    loss_fn = jax.jit(lstm_combined_loss)
    total, comps = loss_fn(predictions, targets, prev_price, mcao_features)
    jax.block_until_ready((total, comps))

    ref_total, ref_comps = lstm_combined_loss_ref(
        predictions, targets, prev_price, mcao_features)

    assert total.shape == ()
    assert not bool(jnp.isnan(total))
    assert abs(float(total) - float(ref_total)) < 1e-5
    for name in ("mse", "direction", "smoothness", "mcao_reg"):
        assert abs(float(comps[name]) - float(ref_comps[name])) < 1e-5, name

    print("KERNEL_OK")
</pallas_src>

<mosaic_0001>
module attributes {stable_mosaic.version = 11 : i64} {
  func.func @combined_loss_kernel(%arg0: i32, %arg1: memref<1x2xf32, #tpu.memory_space<vmem>>, %arg2: memref<1x2xf32, #tpu.memory_space<vmem>>, %arg3: memref<1x2xf32, #tpu.memory_space<vmem>>, %arg4: memref<8x512xf32, #tpu.memory_space<vmem>>, %arg5: memref<5xf32, #tpu.memory_space<smem>>, %arg6: memref<1xf32, #tpu.memory_space<smem>>) attributes {dimension_semantics = [#tpu.dimension_semantics<arbitrary>], iteration_bounds = array<i64: 1>, scalar_prefetch = 0 : i64, scratch_operands = 1 : i64, tpu.core_type = #tpu.core_type<tc>, window_params = [{pipeline_mode = #tpu.pipeline_mode<synchronous>, transform_indices = @transform_0, window_bounds = array<i64: 1, 2>}, {pipeline_mode = #tpu.pipeline_mode<synchronous>, transform_indices = @transform_1, window_bounds = array<i64: 1, 2>}, {pipeline_mode = #tpu.pipeline_mode<synchronous>, transform_indices = @transform_2, window_bounds = array<i64: 1, 2>}, {transform_indices = @transform_3, window_bounds = array<i64: 8, 512>}, {transform_indices = @transform_4, window_bounds = array<i64: 5>}]} {
    %c0_i32 = arith.constant 0 : i32
    %0 = arith.cmpi eq, %arg0, %c0_i32 : i32
    %1 = arith.extui %0 : i1 to i32
    %c0_i32_0 = arith.constant 0 : i32
    %2 = arith.cmpi ne, %1, %c0_i32_0 : i32
    scf.if %2 {
      %cst_6 = arith.constant 0.000000e+00 : f32
      %c0_7 = arith.constant 0 : index
      %15 = memref.load %arg6[%c0_7] : memref<1xf32, #tpu.memory_space<smem>>
      memref.store %cst_6, %arg6[%c0_7] : memref<1xf32, #tpu.memory_space<smem>>
    } else {
    }
    %c0 = arith.constant 0 : index
    %3 = memref.load %arg6[%c0] : memref<1xf32, #tpu.memory_space<smem>>
    %c0_1 = arith.constant 0 : index
    %c0_2 = arith.constant 0 : index
    %4 = vector.load %arg4[%c0_1, %c0_2] : memref<8x512xf32, #tpu.memory_space<vmem>>, vector<8x512xf32>
    %5 = math.absf %4 : vector<8x512xf32>
    %6 = vector.shape_cast %5 : vector<8x512xf32> to vector<1x8x512xf32>
    %cst = arith.constant dense<0.000000e+00> : vector<1xf32>
    %7 = vector.multi_reduction <add>, %6, %cst [1, 2] : vector<1x8x512xf32> to vector<1xf32>
    %8 = vector.shape_cast %7 : vector<1xf32> to vector<1x1x1xf32>
    %9 = vector.extract %8[0, 0, 0] : f32 from vector<1x1x1xf32>
    %10 = arith.addf %3, %9 : f32
    %c0_3 = arith.constant 0 : index
    %11 = memref.load %arg6[%c0_3] : memref<1xf32, #tpu.memory_space<smem>>
    memref.store %10, %arg6[%c0_3] : memref<1xf32, #tpu.memory_space<smem>>
    %c0_i32_4 = arith.constant 0 : i32
    %12 = arith.cmpi eq, %arg0, %c0_i32_4 : i32
    %13 = arith.extui %12 : i1 to i32
    %c0_i32_5 = arith.constant 0 : i32
    %14 = arith.cmpi ne, %13, %c0_i32_5 : i32
    scf.if %14 {
      %c0_6 = arith.constant 0 : index
      %c0_7 = arith.constant 0 : index
      %15 = vector.load %arg1[%c0_6, %c0_7] : memref<1x2xf32, #tpu.memory_space<vmem>>, vector<1x2xf32>
      %c0_8 = arith.constant 0 : index
      %c0_9 = arith.constant 0 : index
      %16 = vector.load %arg2[%c0_8, %c0_9] : memref<1x2xf32, #tpu.memory_space<vmem>>, vector<1x2xf32>
      %c0_10 = arith.constant 0 : index
      %c0_11 = arith.constant 0 : index
      %17 = vector.load %arg3[%c0_10, %c0_11] : memref<1x2xf32, #tpu.memory_space<vmem>>, vector<1x2xf32>
      %18 = arith.subf %15, %16 : vector<1x2xf32>
      %19 = arith.subf %15, %17 : vector<1x2xf32>
      %20 = arith.subf %16, %17 : vector<1x2xf32>
      %21 = arith.mulf %18, %18 : vector<1x2xf32>
      %cst_12 = arith.constant 0.000000e+00 : f32
      %22 = vector.broadcast %cst_12 : f32 to vector<1x2xf32>
      %23 = arith.cmpf ogt, %20, %22 : vector<1x2xf32>
      %cst_13 = arith.constant 1.000000e+00 : f32
      %cst_14 = arith.constant 0.000000e+00 : f32
      %24 = vector.broadcast %cst_13 : f32 to vector<1x2xf32>
      %25 = vector.broadcast %cst_14 : f32 to vector<1x2xf32>
      %26 = arith.select %23, %24, %25 : vector<1x2xi1>, vector<1x2xf32>
      %cst_15 = arith.constant 0.000000e+00 : f32
      %27 = vector.broadcast %cst_15 : f32 to vector<1x2xf32>
      %28 = arith.cmpf ogt, %19, %27 : vector<1x2xf32>
      %cst_16 = arith.constant 1.31326163 : f32
      %29 = vector.broadcast %cst_16 : f32 to vector<1x2xf32>
      %30 = arith.subf %29, %26 : vector<1x2xf32>
      %cst_17 = arith.constant 0.693147182 : f32
      %31 = vector.broadcast %cst_17 : f32 to vector<1x2xf32>
      %32 = arith.select %28, %30, %31 : vector<1x2xi1>, vector<1x2xf32>
      %33 = math.absf %19 : vector<1x2xf32>
      %34 = tpu.concatenate %21, %32, %33 in 0 : vector<1x2xf32>, vector<1x2xf32>, vector<1x2xf32> -> vector<3x2xf32>
      %cst_18 = arith.constant dense<0.000000e+00> : vector<3xf32>
      %35 = vector.multi_reduction <add>, %34, %cst_18 [1] : vector<3x2xf32> to vector<3xf32>
      %36 = vector.shape_cast %35 : vector<3xf32> to vector<3x1xf32>
      %37 = vector.extract_strided_slice %36 {offsets = [0, 0], sizes = [1, 1], strides = [1, 1]} : vector<3x1xf32> to vector<1x1xf32>
      %38 = vector.extract %37[0, 0] : f32 from vector<1x1xf32>
      %cst_19 = arith.constant 5.000000e-01 : f32
      %39 = arith.mulf %38, %cst_19 : f32
      %40 = vector.extract_strided_slice %36 {offsets = [1, 0], sizes = [1, 1], strides = [1, 1]} : vector<3x1xf32> to vector<1x1xf32>
      %41 = vector.extract %40[0, 0] : f32 from vector<1x1xf32>
      %cst_20 = arith.constant 5.000000e-01 : f32
      %42 = arith.mulf %41, %cst_20 : f32
      %43 = vector.extract_strided_slice %36 {offsets = [2, 0], sizes = [1, 1], strides = [1, 1]} : vector<3x1xf32> to vector<1x1xf32>
      %44 = vector.extract %43[0, 0] : f32 from vector<1x1xf32>
      %cst_21 = arith.constant 5.000000e-01 : f32
      %45 = arith.mulf %44, %cst_21 : f32
      %c0_22 = arith.constant 0 : index
      %46 = memref.load %arg6[%c0_22] : memref<1xf32, #tpu.memory_space<smem>>
      %cst_23 = arith.constant 1.562500e-02 : f32
      %47 = arith.mulf %46, %cst_23 : f32
      %cst_24 = arith.constant 6.000000e-01 : f32
      %48 = arith.mulf %cst_24, %39 : f32
      %cst_25 = arith.constant 3.000000e-01 : f32
      %49 = arith.mulf %cst_25, %42 : f32
      %50 = arith.addf %48, %49 : f32
      %cst_26 = arith.constant 5.000000e-02 : f32
      %51 = arith.mulf %cst_26, %45 : f32
      %52 = arith.addf %50, %51 : f32
      %cst_27 = arith.constant 5.000000e-02 : f32
      %53 = arith.mulf %cst_27, %47 : f32
      %54 = arith.addf %52, %53 : f32
      %c0_28 = arith.constant 0 : index
      %55 = memref.load %arg5[%c0_28] : memref<5xf32, #tpu.memory_space<smem>>
      memref.store %54, %arg5[%c0_28] : memref<5xf32, #tpu.memory_space<smem>>
      %c1 = arith.constant 1 : index
      %56 = memref.load %arg5[%c1] : memref<5xf32, #tpu.memory_space<smem>>
      memref.store %39, %arg5[%c1] : memref<5xf32, #tpu.memory_space<smem>>
      %c2 = arith.constant 2 : index
      %57 = memref.load %arg5[%c2] : memref<5xf32, #tpu.memory_space<smem>>
      memref.store %42, %arg5[%c2] : memref<5xf32, #tpu.memory_space<smem>>
      %c3 = arith.constant 3 : index
      %58 = memref.load %arg5[%c3] : memref<5xf32, #tpu.memory_space<smem>>
      memref.store %45, %arg5[%c3] : memref<5xf32, #tpu.memory_space<smem>>
      %c4 = arith.constant 4 : index
      %59 = memref.load %arg5[%c4] : memref<5xf32, #tpu.memory_space<smem>>
      memref.store %47, %arg5[%c4] : memref<5xf32, #tpu.memory_space<smem>>
    } else {
    }
    return
  }
  func.func @transform_0(%arg0: i32) -> (i32, i32) {
    %c0_i32 = arith.constant 0 : i32
    %c0_i32_0 = arith.constant 0 : i32
    %c0_i32_1 = arith.constant 0 : i32
    return %c0_i32, %c0_i32_0 : i32, i32
  }
  func.func @transform_1(%arg0: i32) -> (i32, i32) {
    %c0_i32 = arith.constant 0 : i32
    %c0_i32_0 = arith.constant 0 : i32
    %c0_i32_1 = arith.constant 0 : i32
    return %c0_i32, %c0_i32_0 : i32, i32
  }
  func.func @transform_2(%arg0: i32) -> (i32, i32) {
    %c0_i32 = arith.constant 0 : i32
    %c0_i32_0 = arith.constant 0 : i32
    %c0_i32_1 = arith.constant 0 : i32
    return %c0_i32, %c0_i32_0 : i32, i32
  }
  func.func @transform_3(%arg0: i32) -> (i32, i32) {
    %c0_i32 = arith.constant 0 : i32
    %c0_i32_0 = arith.constant 0 : i32
    return %arg0, %c0_i32 : i32, i32
  }
  func.func @transform_4(%arg0: i32) -> i32 {
    %c0_i32 = arith.constant 0 : i32
    %c0_i32_0 = arith.constant 0 : i32
    return %c0_i32 : i32
  }
}

</mosaic_0001>

<llo_original>
// kernel: lstm_combined_loss.1
$region0: #{lstm_combined_loss.1}
  #allocation0 [shape = 'u32[]', space=smem, size = 0x4, offset = 0x4, fixed_abs, tag = 'smem constant byte address 0x4 - core index']
  #allocation1 [shape = 'u32[144,128]{1,0:T(1,128)}', space=vmem, size = 0x12000, scoped, tag = 'internal scratch']
  #allocation2 [shape = 'f32[1]{0:T(128)}', space=smem, size = 0x200, scoped, tag = 'scratch operand']
  %s0 = inlined_call_operand.vmem [shape: f32[1,2], index: 0, kind: input, shape index: {}]
  %s1 = inlined_call_operand.vmem [shape: f32[1,2], index: 1, kind: input, shape index: {}]
  %s2 = inlined_call_operand.vmem [shape: f32[1,2], index: 2, kind: input, shape index: {}]
  %s3 = inlined_call_operand.vmem [shape: f32[8,512], index: 3, kind: input, shape index: {}]
  %s4 = inlined_call_operand.vmem [shape: f32[5], index: 4, kind: output, shape index: {}]
  %s5 = sld [smem:[#allocation0]]
  $region34: #{lstm_combined_loss.1} parent=0
    _
  %s7 = ssub.s32 1, %s5
  %s8 = scalar_select 0, %s7, %s5
  $region1: #{lstm_combined_loss.1} parent=0
    #allocation3 [shape = 'u8[512]{0}', space=smem, size = 0x200, scoped, tag = 'output window, operand 0, single buffered']
    #allocation4 [shape = 's32[1]{0}', space=sflag, size = 0x4, scoped, tag = 'scoped memory for lstm_combined_loss.1']
    %9 = vsyncpa [#allocation4], 0
    // Predicated region
    $region2: #{lstm_combined_loss.1} parent=1 // pred_check
      _
    $region3: #{lstm_combined_loss.1} parent=1 // pred_check_branch
      %11 = sbr.rel (0) target = $region5
    $region4: #{lstm_combined_loss.1} parent=1 // pred_region
      _
    $region5: #{lstm_combined_loss.1} parent=1 // pred_fallthru
      _
    // Predicated region
    $region6: #{lstm_combined_loss.1} parent=1 // pred_check
      _
    $region7: #{lstm_combined_loss.1} parent=1 // pred_check_branch
      %13 = sbr.rel (0) target = $region9
    $region8: #{lstm_combined_loss.1} parent=1 // pred_region
      _
    $region9: #{lstm_combined_loss.1} parent=1 // pred_fallthru
      _
    // Predicated region
    $region10: #{lstm_combined_loss.1} parent=1 // pred_check
      _
    $region11: #{lstm_combined_loss.1} parent=1 // pred_check_branch
      %15 = sbr.rel (0) target = $region13
    $region12: #{lstm_combined_loss.1} parent=1 // pred_region
      _
    $region13: #{lstm_combined_loss.1} parent=1 // pred_fallthru
      _
    // Predicated region
    $region14: #{lstm_combined_loss.1} parent=1 // pred_check
      _
    $region15: #{lstm_combined_loss.1} parent=1 // pred_check_branch
      %17 = sbr.rel (0) target = $region17
    $region16: #{lstm_combined_loss.1} parent=1 // pred_region
      _
    $region17: #{lstm_combined_loss.1} parent=1 // pred_fallthru
      _
    %p18 = scmp.eq.s32.totalorder 0, 0
    // Predicated region
    $region18: #{lstm_combined_loss.1} parent=1 // pred_check
      %p19 = pneg %p18
    $region19: #{lstm_combined_loss.1} parent=1 // pred_check_branch
      %21 = sbr.rel (%p19) target = $region21
    $region20: #{lstm_combined_loss.1} parent=1 // pred_region
      %s22 = scalar_lea.smem [#allocation2], 0
      %23 = sst [smem:[%s22]] 0.0
    $region21: #{lstm_combined_loss.1} parent=1 // pred_fallthru
      _
    %s24 = sld [smem:[#allocation2]]
    %v25 = vld [vmem:[%s3] sm:$0xff]
    %v26 = vld [vmem:[%s3 + $0x8] sm:$0xff]
    %v27 = vld [vmem:[%s3 + $0x10] sm:$0xff]
    %v28 = vld [vmem:[%s3 + $0x18] sm:$0xff]
    %v29 = vand.u32 2147483647, %v25
    %v30 = vand.u32 2147483647, %v26
    %v31 = vand.u32 2147483647, %v27
    %v32 = vand.u32 2147483647, %v28
    %v33 = vadd.f32 %v29, %v30
    %v34 = vadd.f32 %v33, %v31
    %v35 = vadd.f32 %v34, %v32
    %36 = vadd.xlane.f32.xlu0 %v35
    %v37 = vpop.xlane.xlu0 %36
    %v38 = vrot.slane %v37, 4
    %v39 = vadd.f32 %v37, %v38
    %v40 = vrot.slane %v39, 2
    %v41 = vadd.f32 %v39, %v40
    %v42 = vrot.slane %v41, 1
    %v43 = vadd.f32 %v41, %v42
    %s44 = vtos %v43
    %s45 = sadd.f32 %s24, %s44
    %s46 = scalar_lea.smem [#allocation2], 0
    %47 = sst [smem:[%s46]] %s45
    // Predicated region
    $region22: #{lstm_combined_loss.1} parent=1 // pred_check
      %p48 = pneg %p18
    $region23: #{lstm_combined_loss.1} parent=1 // pred_check_branch
      %50 = sbr.rel (%p48) target = $region25
    $region24: #{lstm_combined_loss.1} parent=1 // pred_region
      %v51 = vld [vmem:[%s0] sm:$0x1]
      %v52 = vld [vmem:[%s1] sm:$0x1]
      %v53 = vld [vmem:[%s2] sm:$0x1]
      %v54 = vsub.f32 %v51, %v52
      %v55 = vsub.f32 %v51, %v53
      %v56 = vsub.f32 %v52, %v53
      %v57 = vmul.f32 %v54, %v54
      %vm58 = vcmp.gt.f32.partialorder %v56, 0.0
      %v59 = vsel %vm58, 1.0, 0.0
      %vm60 = vcmp.gt.f32.partialorder %v55, 0.0
      %v61 = vsub.f32 1.3132616, %v59
      %v62 = vsel %vm60, %v61, 0.6931472
      %v63 = vand.u32 2147483647, %v55
      %v65 = vlaneseq
      %v66 = vshrl.u32 %v65, 7
      %v67 = vsub.s32 0, %v66
      %v68 = vrot.slane %v62, %v67
      %v71 = vlaneseq
      %v72 = vshrl.u32 %v71, 7
      %v73 = vsub.s32 0, %v72
      %v74 = vrot.slane %v63, %v73
      %vm76 = vcmask 1040384
      %v77 = vsel %vm76, %v57, %v68
      %vm78 = vcmask 1041408
      %v79 = vsel %vm78, %v77, %v74
      %vm80 = vcmask 10240
      %v81 = vsel %vm80, %v79, 0.0
      %82 = vadd.xlane.f32.xlu0 %v81
      %v83 = vpop.xlane.xlu0 %82
      %s84 = vtos %v83
      %s85 = smul.f32 %s84, 0.5
      %v86 = vrot.slane %v83, 1
      %s87 = vtos %v86
      %s88 = smul.f32 %s87, 0.5
      %v89 = vrot.slane %v83, 2
      %s90 = vtos %v89
      %s91 = smul.f32 %s90, 0.5
      %s92 = sld [smem:[#allocation2]]
      %s93 = smul.f32 %s92, 0.015625
      %s94 = smul.f32 %s85, 0.6
      %s95 = smul.f32 %s88, 0.3
      %s96 = sadd.f32 %s94, %s95
      %s97 = smul.f32 %s91, 0.05
      %s98 = sadd.f32 %s96, %s97
      %s99 = smul.f32 %s93, 0.05
      %s100 = sadd.f32 %s98, %s99
      %s101 = scalar_lea.smem [#allocation3], 0
      %102 = sst [smem:[%s101]] %s100
      %s103 = scalar_lea.smem [#allocation3], 1
      %104 = sst [smem:[%s103]] %s85
      %s105 = scalar_lea.smem [#allocation3], 2
      %106 = sst [smem:[%s105]] %s88
      %s107 = scalar_lea.smem [#allocation3], 3
      %108 = sst [smem:[%s107]] %s91
      %s109 = scalar_lea.smem [#allocation3], 4
      %110 = sst [smem:[%s109]] %s93
    $region25: #{lstm_combined_loss.1} parent=1 // pred_fallthru
      _
    // Predicated region
    $region26: #{lstm_combined_loss.1} parent=1 // pred_check
      _
    $region27: #{lstm_combined_loss.1} parent=1 // pred_check_branch
      %112 = sbr.rel (0) target = $region29
    $region28: #{lstm_combined_loss.1} parent=1 // pred_region
      %s114 = ssub.s32 16, 16
      %115 = vsyncadd [#allocation4], %s114
      %s117 = sshll.u32 %s4, 4
      %s118 = int_to_ptr.vmem [resolvable:$true] %s117
      %120 = dma.smem_to_vmem [#allocation3], 16, %s118, [#allocation4]
    $region29: #{lstm_combined_loss.1} parent=1 // pred_fallthru
      _
    // Predicated region
    $region30: #{lstm_combined_loss.1} parent=1 // pred_check
      _
    $region31: #{lstm_combined_loss.1} parent=1 // pred_check_branch
      %122 = sbr.rel (0) target = $region33
    $region32: #{lstm_combined_loss.1} parent=1 // pred_region
      %123 = dma.done [#allocation4], 16
    $region33: #{lstm_combined_loss.1} parent=1 // pred_fallthru
      _
    %124 = sfence
    %125 = vsyncpa [#allocation4], 1

</llo_original>
